<compile_context>
chip_gen: v6e
topology: v6e:2x2x1
jax: 0.10.0
libtpu: 0.0.40
codegen_flags: <defaults>
</compile_context>

<pallas_src>
import jax
import jax.numpy as jnp
import numpy as np
from jax.experimental import pallas as pl
from jax.experimental.pallas import tpu as pltpu


_VMEM_BUDGET_BYTES = 40 * 1024 * 1024   # per-slab working-set target
_VMEM_LIMIT_BYTES = 48 * 1024 * 1024    # explicit scoped-VMEM ceiling (< v7x 64 MiB)


def attention_kernel(x_ref, w_ref, out_ref, attn_ref):
    # x_ref: (TB, L, H) batch slab, w_ref: (1, H) shared weight vector.
    x = x_ref[...]                              # native dtype (bf16 stays bf16)
    w = w_ref[...].astype(x.dtype)              # (1, H)

    # scores[b, l] = sum_h x[b, l, h] * w[h]
    # VPU multiply + lane reduce with f32 accumulation; avoids an M=1 MXU matmul.
    scores = jnp.sum((x * w[:, None, :]).astype(jnp.float32), axis=-1)   # (TB, L)

    # F.relu then softmax over the sequence axis (mask renorm is an identity).
    scores = jnp.maximum(scores, 0.0)
    m = jnp.max(scores, axis=-1, keepdims=True)
    e = jnp.exp(scores - m)
    denom = jnp.sum(e, axis=-1, keepdims=True)
    # Exact reciprocal: approx=True (EUP) would violate the 1e-5 reference tol.
    attn = e * pl.reciprocal(denom, approx=False)                        # (TB, L) f32

    attn_ref[...] = attn.astype(attn_ref.dtype)

    # weighted = inputs * attn[..., None]; out = weighted.sum(dim=1)
    # VPU multiply + sublane reduce over L, accumulated in f32.
    out = jnp.sum((x * attn.astype(x.dtype)[:, :, None]).astype(jnp.float32),
                  axis=1)                                                # (TB, H)
    out_ref[...] = out.astype(out_ref.dtype)


def _pick_block_b(B, L, H, itemsize):
    # Working set per batch row:
    #   2x input block (double-buffered)  + ~3 product/upcast f32 temporaries
    #   + 2x each (small) output block.
    bytes_per_row = (2 * L * H * itemsize
                     + 3 * L * H * 4
                     + 2 * H * itemsize
                     + 2 * L * 4)
    tb = max(1, _VMEM_BUDGET_BYTES // max(bytes_per_row, 1))
    tb = min(tb, B)
    if B >= 32:
        # Guarantee >= ~4 grid steps (DMA/compute overlap, both v7x TCs busy)
        # while keeping the slab a multiple of 8 rows.
        tb = min(tb, max(8, ((B + 3) // 4) // 8 * 8))
    if tb < B and tb >= 8:
        # Sublane-dense output blocks; round DOWN only (never inflate the slab
        # past the VMEM budget). tb < 8 (huge L*H rows) stays un-rounded and
        # accepts a sublane-sparse block, per review.
        tb = (tb // 8) * 8
    return tb


def attention_forward(inputs, att_weights, *, block_b=None):
    """inputs: (B, L, H) batch_first, att_weights: (1, H).

    Returns (weighted.sum(1): (B, H) in inputs.dtype, attentions: (B, L) f32).
    """
    B, L, H = inputs.shape
    itemsize = jnp.dtype(inputs.dtype).itemsize

    if block_b is None:
        block_b = _pick_block_b(B, L, H, itemsize)

    # Ragged last slab handled by Pallas (OOB writes dropped; rows independent)
    # -> no host-side padding copy of `inputs`.
    grid = (pl.cdiv(B, block_b),)

    out_shapes = (
        jax.ShapeDtypeStruct((B, H), inputs.dtype),   # weighted.sum(1)
        jax.ShapeDtypeStruct((B, L), jnp.float32),    # attention probabilities
    )

    cost = pl.CostEstimate(
        flops=4 * B * L * H + 6 * B * L,
        transcendentals=B * L,
        bytes_accessed=(B * L * H + H + B * H) * itemsize + B * L * 4,
    )

    out, attn = pl.pallas_call(
        attention_kernel,
        out_shape=out_shapes,
        grid_spec=pltpu.PrefetchScalarGridSpec(
            num_scalar_prefetch=0,
            grid=grid,
            in_specs=[
                pl.BlockSpec((block_b, L, H), lambda b: (b, 0, 0)),  # batch slab
                pl.BlockSpec((1, H), lambda b: (0, 0)),              # shared weights
            ],
            out_specs=[
                pl.BlockSpec((block_b, H), lambda b: (b, 0)),
                pl.BlockSpec((block_b, L), lambda b: (b, 0)),
            ],
        ),
        compiler_params=pltpu.CompilerParams(
            dimension_semantics=(pltpu.PARALLEL,),
            vmem_limit_bytes=_VMEM_LIMIT_BYTES,
        ),
        cost_estimate=cost,
    )(inputs, att_weights)
    return out, attn


def attention_reference(inputs, att_weights):
    # Pure-JAX mirror of the PyTorch forward (batch_first=True).
    scores = jnp.einsum("blh,oh->bl", inputs, att_weights)       # bmm + squeeze
    scores = jax.nn.relu(scores)
    attn = jax.nn.softmax(scores, axis=-1)
    masked = attn * jnp.ones_like(attn)                          # identity mask
    attn = masked / jnp.sum(masked, axis=-1, keepdims=True)
    weighted = inputs * attn[..., None]
    return weighted.sum(axis=1), attn


if __name__ == "__main__":
    B, L, H = 2, 8, 32   # batch=2, seq=8, hidden=32

    key = jax.random.PRNGKey(0)
    k_x, k_w = jax.random.split(key)

    # Deterministic init matching nn.init.uniform_(-stdv, stdv), stdv = 1/sqrt(H).
    stdv = 1.0 / np.sqrt(H)
    att_weights = jax.random.uniform(
        k_w, (1, H), dtype=jnp.float32, minval=-stdv, maxval=stdv)
    inputs = jax.random.normal(k_x, (B, L, H), dtype=jnp.float32)

    out, attn = attention_forward(inputs, att_weights)
    jax.block_until_ready((out, attn))

    ref_out, ref_attn = attention_reference(inputs, att_weights)
    np.testing.assert_allclose(np.asarray(out), np.asarray(ref_out),
                               rtol=1e-5, atol=1e-5)
    np.testing.assert_allclose(np.asarray(attn), np.asarray(ref_attn),
                               rtol=1e-5, atol=1e-5)

    print("KERNEL_OK")
</pallas_src>

<mosaic_0001>
module attributes {stable_mosaic.version = 11 : i64} {
  func.func @attention_kernel(%arg0: i32, %arg1: memref<2x8x32xf32, #tpu.memory_space<vmem>>, %arg2: memref<1x32xf32, #tpu.memory_space<vmem>>, %arg3: memref<2x32xf32, #tpu.memory_space<vmem>>, %arg4: memref<2x8xf32, #tpu.memory_space<vmem>>) attributes {dimension_semantics = [#tpu.dimension_semantics<parallel>], iteration_bounds = array<i64: 1>, scalar_prefetch = 0 : i64, scratch_operands = 0 : i64, tpu.core_type = #tpu.core_type<tc>, window_params = [{transform_indices = @transform_0, window_bounds = array<i64: 2, 8, 32>}, {pipeline_mode = #tpu.pipeline_mode<synchronous>, transform_indices = @transform_1, window_bounds = array<i64: 1, 32>}, {transform_indices = @transform_2, window_bounds = array<i64: 2, 32>}, {transform_indices = @transform_3, window_bounds = array<i64: 2, 8>}]} {
    %c0 = arith.constant 0 : index
    %c0_0 = arith.constant 0 : index
    %c0_1 = arith.constant 0 : index
    %0 = vector.load %arg1[%c0, %c0_0, %c0_1] : memref<2x8x32xf32, #tpu.memory_space<vmem>>, vector<2x8x32xf32>
    %c0_2 = arith.constant 0 : index
    %c0_3 = arith.constant 0 : index
    %1 = vector.load %arg2[%c0_2, %c0_3] : memref<1x32xf32, #tpu.memory_space<vmem>>, vector<1x32xf32>
    %2 = vector.shape_cast %1 : vector<1x32xf32> to vector<1x1x32xf32>
    %3 = vector.broadcast %2 : vector<1x1x32xf32> to vector<2x8x32xf32>
    %4 = arith.mulf %0, %3 : vector<2x8x32xf32>
    %cst = arith.constant dense<0.000000e+00> : vector<2x8xf32>
    %5 = vector.multi_reduction <add>, %4, %cst [2] : vector<2x8x32xf32> to vector<2x8xf32>
    %cst_4 = arith.constant 0.000000e+00 : f32
    %6 = vector.broadcast %cst_4 : f32 to vector<2x8xf32>
    %7 = arith.maximumf %5, %6 : vector<2x8xf32>
    %cst_5 = arith.constant dense<0xFF800000> : vector<2xf32>
    %8 = vector.multi_reduction <maximumf>, %7, %cst_5 [1] : vector<2x8xf32> to vector<2xf32>
    %9 = vector.shape_cast %8 : vector<2xf32> to vector<2x1xf32>
    %10 = vector.broadcast %9 : vector<2x1xf32> to vector<2x8xf32>
    %11 = arith.subf %7, %10 : vector<2x8xf32>
    %12 = math.exp %11 : vector<2x8xf32>
    %cst_6 = arith.constant dense<0.000000e+00> : vector<2xf32>
    %13 = vector.multi_reduction <add>, %12, %cst_6 [1] : vector<2x8xf32> to vector<2xf32>
    %14 = vector.shape_cast %13 : vector<2xf32> to vector<2x1xf32>
    %15 = tpu.reciprocal %14 : vector<2x1xf32> -> vector<2x1xf32>
    %16 = vector.broadcast %15 : vector<2x1xf32> to vector<2x8xf32>
    %17 = arith.mulf %12, %16 : vector<2x8xf32>
    %c0_7 = arith.constant 0 : index
    %c0_8 = arith.constant 0 : index
    %18 = vector.load %arg4[%c0_7, %c0_8] : memref<2x8xf32, #tpu.memory_space<vmem>>, vector<2x8xf32>
    tpu.vector_store %arg4[%c0_7, %c0_8], %17 {strides = array<i32>} : memref<2x8xf32, #tpu.memory_space<vmem>>, vector<2x8xf32>,
    %19 = vector.shape_cast %17 : vector<2x8xf32> to vector<2x8x1xf32>
    %20 = vector.broadcast %19 : vector<2x8x1xf32> to vector<2x8x32xf32>
    %21 = arith.mulf %0, %20 : vector<2x8x32xf32>
    %cst_9 = arith.constant dense<0.000000e+00> : vector<2x32xf32>
    %22 = vector.multi_reduction <add>, %21, %cst_9 [1] : vector<2x8x32xf32> to vector<2x32xf32>
    %c0_10 = arith.constant 0 : index
    %c0_11 = arith.constant 0 : index
    %23 = vector.load %arg3[%c0_10, %c0_11] : memref<2x32xf32, #tpu.memory_space<vmem>>, vector<2x32xf32>
    tpu.vector_store %arg3[%c0_10, %c0_11], %22 {strides = array<i32>} : memref<2x32xf32, #tpu.memory_space<vmem>>, vector<2x32xf32>,
    return
  }
  func.func @transform_0(%arg0: i32) -> (i32, i32, i32) {
    %c0_i32 = arith.constant 0 : i32
    %c0_i32_0 = arith.constant 0 : i32
    %c0_i32_1 = arith.constant 0 : i32
    return %arg0, %c0_i32, %c0_i32_0 : i32, i32, i32
  }
  func.func @transform_1(%arg0: i32) -> (i32, i32) {
    %c0_i32 = arith.constant 0 : i32
    %c0_i32_0 = arith.constant 0 : i32
    %c0_i32_1 = arith.constant 0 : i32
    return %c0_i32, %c0_i32_0 : i32, i32
  }
  func.func @transform_2(%arg0: i32) -> (i32, i32) {
    %c0_i32 = arith.constant 0 : i32
    %c0_i32_0 = arith.constant 0 : i32
    return %arg0, %c0_i32 : i32, i32
  }
  func.func @transform_3(%arg0: i32) -> (i32, i32) {
    %c0_i32 = arith.constant 0 : i32
    %c0_i32_0 = arith.constant 0 : i32
    return %arg0, %c0_i32 : i32, i32
  }
}

</mosaic_0001>

<llo_original>
// kernel: tpu_custom_call.1
$region0: #{tpu_custom_call.1}
  #allocation0 [shape = 'u32[]', space=smem, size = 0x4, offset = 0x4, fixed_abs, tag = 'smem constant byte address 0x4 - core index']
  #allocation1 [shape = 'u32[144,128]{1,0:T(1,128)}', space=vmem, size = 0x12000, scoped, tag = 'internal scratch']
  %s0 = inlined_call_operand.hbm [shape: f32[2,8,32], index: 0, kind: input, shape index: {}]
  %s1 = inlined_call_operand.vmem [shape: f32[1,32], index: 1, kind: input, shape index: {}]
  %s2 = inlined_call_operand.hbm [shape: f32[2,32], index: 2, kind: output, shape index: {0}]
  %s3 = inlined_call_operand.hbm [shape: f32[2,8], index: 3, kind: output, shape index: {1}]
  %4 = xla_tuple %s2, %s3
  %s5 = sld [smem:[#allocation0]]
  $region30: #{tpu_custom_call.1} parent=0
    _
  %s7 = ssub.s32 1, %s5
  %s8 = scalar_select 0, %s7, %s5
  $region1: #{tpu_custom_call.1} parent=0
    #allocation2 [shape = 'u8[8192]{0}', space=vmem, size = 0x2000, scoped, tag = 'input window, operand 0, single buffered']
    #allocation3 [shape = 's32[1]{0}', space=sflag, size = 0x4, scoped, tag = 'scoped memory for tpu_custom_call.1']
    #allocation4 [shape = 's32[1]{0}', space=sflag, size = 0x4, scoped, tag = 'scoped memory for tpu_custom_call.1']
    #allocation5 [shape = 'u8[1024]{0}', space=vmem, size = 0x400, scoped, tag = 'output window, operand 0, single buffered']
    #allocation6 [shape = 'u8[1024]{0}', space=vmem, size = 0x400, scoped, tag = 'output window, operand 1, single buffered']
    #allocation7 [shape = 's32[1]{0}', space=sflag, size = 0x4, scoped, tag = 'scoped memory for tpu_custom_call.1']
    %9 = vsyncpa [#allocation3], 0
    %10 = vsyncpa [#allocation4], 0
    %11 = vsyncpa [#allocation7], 0
    // Predicated region
    $region2: #{tpu_custom_call.1} parent=1 // pred_check
      _
    $region3: #{tpu_custom_call.1} parent=1 // pred_check_branch
      %13 = sbr.rel (0) target = $region5
    $region4: #{tpu_custom_call.1} parent=1 // pred_region
      %s15 = ssub.s32 256, 256
      %16 = vsyncadd [#allocation3], %s15
      %s17 = sshll.u32 [#allocation2], 4
      %s18 = int_to_ptr.vmem [resolvable:$true] %s17
      %23 = dma.hbm_to_vmem [thread:$0]  %s0, 256, %s18, [#allocation3], 128, 128, 8
    $region5: #{tpu_custom_call.1} parent=1 // pred_fallthru
      _
    // Predicated region
    $region6: #{tpu_custom_call.1} parent=1 // pred_check
      _
    $region7: #{tpu_custom_call.1} parent=1 // pred_check_branch
      %25 = sbr.rel (0) target = $region9
    $region8: #{tpu_custom_call.1} parent=1 // pred_region
      _
    $region9: #{tpu_custom_call.1} parent=1 // pred_fallthru
      _
    // Predicated region
    $region10: #{tpu_custom_call.1} parent=1 // pred_check
      _
    $region11: #{tpu_custom_call.1} parent=1 // pred_check_branch
      %27 = sbr.rel (0) target = $region13
    $region12: #{tpu_custom_call.1} parent=1 // pred_region
      %28 = dma.done [#allocation3], 256
    $region13: #{tpu_custom_call.1} parent=1 // pred_fallthru
      _
    %v29 = vld [vmem:[#allocation2] sm:$0xff]
    %v30 = vld [vmem:[#allocation2 + $0x8] sm:$0xff]
    %v31 = vld [vmem:[%s1] sm:$0x1]
    %v33 = vlaneseq
    %v34 = vshrl.u32 %v33, 7
    %v35 = vsub.s32 0, %v34
    %v36 = vrot.slane %v31, %v35
    %v38 = vmul.f32 %v29, %v36
    %v39 = vmul.f32 %v30, %v36
    %vm40 = vcmask 261120
    %v41 = vsel %vm40, %v38, 0.0
    %42 = vadd.xlane.f32.xlu0 %v41
    %v43 = vpop.xlane.xlu0 %42
    %v44 = vsel %vm40, %v39, 0.0
    %45 = vadd.xlane.f32.xlu0 %v44
    %v46 = vpop.xlane.xlu0 %45
    %v47 = vmax.f32 %v43, 0.0
    %v48 = vmax.f32 %v46, 0.0
    %v51 = vlaneseq
    %v52 = vand.u32 %v51, 127
    %v53 = vlaneseq
    %v54 = vshrl.u32 %v53, 7
    %v55 = vsub.s32 %v52, %v54
    %v56 = vrot.slane %v47, %v55
    %v57 = vlaneseq
    %v58 = vshrl.u32 %v57, 7
    %v59 = vsub.s32 %v52, %v58
    %v60 = vrot.slane %v48, %v59
    %vm61 = vcmask 1041409
    %v62 = vsel %vm61, %v60, %v56
    %vm64 = vcmask 58368
    %v65 = vsel %vm64, %v62, -inf
    %66 = vmax.xlane.f32.xlu0 %v65
    %v67 = vpop.xlane.xlu0 %66
    %v69 = vlaneseq
    %v70 = vshrl.u32 %v69, 7
    %v71 = vsub.s32 0, %v70
    %v72 = vrot.slane %v67, %v71
    %v73 = vlaneseq
    %v74 = vshrl.u32 %v73, 7
    %v75 = vsub.s32 1, %v74
    %v76 = vrot.slane %v67, %v75
    %v79 = vsub.f32 %v47, %v72
    %v80 = vsub.f32 %v48, %v76
    %v81 = vmul.f32 %v79, 1.442695
    %v82 = vpow.pop %v81
    %v83 = vmul.f32 %v80, 1.442695
    %v84 = vpow.pop %v83
    %87 = vset.pattern.permute.xlu0 0
    %88 = vperm.xlu0 %87, %v82
    %v89 = vpop.permute.xlu0 %88
    %90 = vset.pattern.permute.xlu0 0
    %91 = vperm.xlu0 %90, %v84
    %v92 = vpop.permute.xlu0 %91
    %v93 = vlaneseq
    %v94 = vshrl.u32 %v93, 7
    %v95 = vsub.s32 %v52, %v94
    %v96 = vrot.slane %v89, %v95
    %v97 = vlaneseq
    %v98 = vshrl.u32 %v97, 7
    %v99 = vsub.s32 %v52, %v98
    %v100 = vrot.slane %v92, %v99
    %v101 = vsel %vm61, %v100, %v96
    %v103 = vsel %vm64, %v101, 0.0
    %104 = vadd.xlane.f32.xlu0 %v103
    %v105 = vpop.xlane.xlu0 %104
    %v106 = vrcp.pop %v105
    %v108 = vlaneseq
    %v109 = vshrl.u32 %v108, 7
    %v110 = vsub.s32 0, %v109
    %v111 = vrot.slane %v106, %v110
    %v112 = vlaneseq
    %v113 = vshrl.u32 %v112, 7
    %v114 = vsub.s32 1, %v113
    %v115 = vrot.slane %v106, %v114
    %v118 = vmul.f32 %v82, %v111
    %v119 = vmul.f32 %v84, %v115
    %122 = vset.pattern.permute.xlu0 0
    %123 = vperm.xlu0 %122, %v118
    %v124 = vpop.permute.xlu0 %123
    %125 = vset.pattern.permute.xlu0 0
    %126 = vperm.xlu0 %125, %v119
    %v127 = vpop.permute.xlu0 %126
    %v128 = vlaneseq
    %v129 = vshrl.u32 %v128, 7
    %v130 = vsub.s32 %v52, %v129
    %v131 = vrot.slane %v124, %v130
    %v132 = vlaneseq
    %v133 = vshrl.u32 %v132, 7
    %v134 = vsub.s32 %v52, %v133
    %v135 = vrot.slane %v127, %v134
    %v136 = vsel %vm61, %v135, %v131
    %138 = vst.msk [vmem:[#allocation6] sm:$0x3] %vm64, %v136
    %v141 = vmul.f32 %v29, %v124
    %v142 = vmul.f32 %v30, %v127
    %v143 = vsel %vm40, %v141, 0.0
    %v144 = vrot.slane %v143, 4
    %v145 = vadd.f32 %v143, %v144
    %v146 = vrot.slane %v145, 2
    %v147 = vadd.f32 %v145, %v146
    %v148 = vrot.slane %v147, 1
    %v149 = vadd.f32 %v147, %v148
    %v150 = vsel %vm40, %v142, 0.0
    %v151 = vrot.slane %v150, 4
    %v152 = vadd.f32 %v150, %v151
    %v153 = vrot.slane %v152, 2
    %v154 = vadd.f32 %v152, %v153
    %v155 = vrot.slane %v154, 1
    %v156 = vadd.f32 %v154, %v155
    %v159 = vsel %vm61, %v156, %v149
    %vm161 = vcmask 254976
    %162 = vst.msk [vmem:[#allocation5] sm:$0x3] %vm161, %v159
    // Predicated region
    $region14: #{tpu_custom_call.1} parent=1 // pred_check
      _
    $region15: #{tpu_custom_call.1} parent=1 // pred_check_branch
      %164 = sbr.rel (0) target = $region17
    $region16: #{tpu_custom_call.1} parent=1 // pred_region
      %s166 = ssub.s32 32, 32
      %167 = vsyncadd [#allocation4], %s166
      %s169 = sshll.u32 [#allocation5], 4
      %s170 = int_to_ptr.vmem [resolvable:$true] %s169
      %172 = dma.vmem_to_hbm [thread:$0]  %s170, 32, %s2, [#allocation4]
    $region17: #{tpu_custom_call.1} parent=1 // pred_fallthru
      _
    // Predicated region
    $region18: #{tpu_custom_call.1} parent=1 // pred_check
      _
    $region19: #{tpu_custom_call.1} parent=1 // pred_check_branch
      %174 = sbr.rel (0) target = $region21
    $region20: #{tpu_custom_call.1} parent=1 // pred_region
      %s176 = ssub.s32 32, 32
      %177 = vsyncadd [#allocation7], %s176
      %s179 = sshll.u32 [#allocation6], 4
      %s180 = int_to_ptr.vmem [resolvable:$true] %s179
      %182 = dma.vmem_to_hbm [thread:$0]  %s180, 32, %s3, [#allocation7]
    $region21: #{tpu_custom_call.1} parent=1 // pred_fallthru
      _
    // Predicated region
    $region22: #{tpu_custom_call.1} parent=1 // pred_check
      _
    $region23: #{tpu_custom_call.1} parent=1 // pred_check_branch
      %184 = sbr.rel (0) target = $region25
    $region24: #{tpu_custom_call.1} parent=1 // pred_region
      %185 = dma.done [#allocation4], 32
    $region25: #{tpu_custom_call.1} parent=1 // pred_fallthru
      _
    // Predicated region
    $region26: #{tpu_custom_call.1} parent=1 // pred_check
      _
    $region27: #{tpu_custom_call.1} parent=1 // pred_check_branch
      %187 = sbr.rel (0) target = $region29
    $region28: #{tpu_custom_call.1} parent=1 // pred_region
      %188 = dma.done [#allocation7], 32
    $region29: #{tpu_custom_call.1} parent=1 // pred_fallthru
      _
    %189 = vsyncpa [#allocation3], 1
    %190 = vsyncpa [#allocation4], 1
    %191 = vsyncpa [#allocation7], 1

</llo_original>
